<compile_context>
chip_gen: v5e
topology: v5e:2x2
jax: 0.10.0
libtpu: 0.0.40
codegen_flags: <defaults>
</compile_context>

<pallas_src>
import functools

import jax
import jax.numpy as jnp
from jax.experimental import pallas as pl
from jax.experimental.pallas import tpu as pltpu


def _round_up(n, m):
    return ((n + m - 1) // m) * m


def mlp_kernel(x_ref, w1_ref, b1_ref, w2_ref, b2_ref, w3_ref, b3_ref, o_ref,
               *, use_bf16_mxu):
    mxu_dt = jnp.bfloat16 if use_bf16_mxu else jnp.float32

    # fc1 -> relu
    h1 = jnp.dot(x_ref[...].astype(mxu_dt), w1_ref[...].astype(mxu_dt),
                 preferred_element_type=jnp.float32)
    h1 = jnp.maximum(h1 + b1_ref[...], 0.0)

    # fc2 -> tanh
    h2 = jnp.dot(h1.astype(mxu_dt), w2_ref[...].astype(mxu_dt),
                 preferred_element_type=jnp.float32)
    h2 = jnp.tanh(h2 + b2_ref[...])

    # fc3 -> sigmoid
    h3 = jnp.dot(h2.astype(mxu_dt), w3_ref[...].astype(mxu_dt),
                 preferred_element_type=jnp.float32)
    o_ref[...] = jax.nn.sigmoid(h3 + b3_ref[...])


def simple_nn_forward(x, w1, b1, w2, b2, w3, b3, *, tile_b=1024,
                      use_bf16_mxu=True):
    """Pallas forward pass for simple_NN.

    x:  [B, n_in]   float32
    w1: [n_in, h1], b1: [1, h1]
    w2: [h1, h2],   b2: [1, h2]
    w3: [h2, 2],    b3: [1, 2]
    returns [B, 2] float32
    """
    B, n_in = x.shape
    n_out = w3.shape[1]

    # Batch tile: multiple of 8 (sublane), clamped so tiny batches still work.
    tile_b = max(8, min(tile_b, _round_up(B, 8)))
    tile_b = _round_up(tile_b, 8)
    b_pad = _round_up(B, tile_b)
    if b_pad != B:
        x = jnp.pad(x, ((0, b_pad - B), (0, 0)))

    grid = (b_pad // tile_b,)
    resident = lambda a: pl.BlockSpec(a.shape, lambda i: (0,) * a.ndim)

    kernel = functools.partial(mlp_kernel, use_bf16_mxu=use_bf16_mxu)
    out = pl.pallas_call(
        kernel,
        out_shape=jax.ShapeDtypeStruct((b_pad, n_out), jnp.float32),
        grid=grid,
        in_specs=[
            pl.BlockSpec((tile_b, n_in), lambda i: (i, 0)),   # x: tiled over batch
            resident(w1), resident(b1),                        # weights/biases stay put
            resident(w2), resident(b2),
            resident(w3), resident(b3),
        ],
        out_specs=pl.BlockSpec((tile_b, n_out), lambda i: (i, 0)),
        compiler_params=pltpu.CompilerParams(
            dimension_semantics=("parallel",),
        ),
    )(x, w1, b1, w2, b2, w3, b3)

    if b_pad != B:
        out = out[:B]
    return out


def init_params(key, n_in, n_hidden1, n_hidden2):
    """Deterministic init mimicking torch.nn.Linear (uniform +/- 1/sqrt(fan_in)).

    Weights are stored transposed ([in, out]) for direct x @ W in the kernel.
    Biases are kept 2-D ([1, out]) for TPU-friendly broadcasting.
    """
    def linear(key, fan_in, fan_out):
        kw, kb = jax.random.split(key)
        bound = 1.0 / (fan_in ** 0.5)
        w = jax.random.uniform(kw, (fan_in, fan_out), jnp.float32, -bound, bound)
        b = jax.random.uniform(kb, (1, fan_out), jnp.float32, -bound, bound)
        return w, b

    k1, k2, k3 = jax.random.split(key, 3)
    w1, b1 = linear(k1, n_in, n_hidden1)
    w2, b2 = linear(k2, n_hidden1, n_hidden2)
    w3, b3 = linear(k3, n_hidden2, 2)
    return w1, b1, w2, b2, w3, b3


def reference_forward(x, w1, b1, w2, b2, w3, b3):
    h1 = jnp.maximum(x @ w1 + b1, 0.0)
    h2 = jnp.tanh(h1 @ w2 + b2)
    return jax.nn.sigmoid(h2 @ w3 + b3)


if __name__ == "__main__":
    n_in, n_hidden1, n_hidden2 = 32, 64, 32

    key = jax.random.PRNGKey(0)
    kx, kp, kx2 = jax.random.split(key, 3)
    params = init_params(kp, n_in, n_hidden1, n_hidden2)

    # Small batch (single grid step).
    batch = 8
    x = jax.random.normal(kx, (batch, n_in), dtype=jnp.float32)
    out = jax.block_until_ready(simple_nn_forward(x, *params))
    ref = reference_forward(x, *params)
    assert out.shape == (batch, 2)
    # bf16 MXU operands -> relaxed tolerance vs. the f32 reference.
    assert jnp.allclose(out, ref, atol=2e-2, rtol=2e-2)

    # Batch that is not a multiple of the tile: exercises padding + multi-step grid.
    batch2 = 20
    x2 = jax.random.normal(kx2, (batch2, n_in), dtype=jnp.float32)
    out2 = jax.block_until_ready(simple_nn_forward(x2, *params, tile_b=8))
    ref2 = reference_forward(x2, *params)
    assert out2.shape == (batch2, 2)
    assert jnp.allclose(out2, ref2, atol=2e-2, rtol=2e-2)

    print("KERNEL_OK")
</pallas_src>

<mosaic_0001>
module attributes {stable_mosaic.version = 11 : i64} {
  func.func @mlp_kernel(%arg0: i32, %arg1: memref<8x32xf32, #tpu.memory_space<vmem>>, %arg2: memref<32x64xf32, #tpu.memory_space<vmem>>, %arg3: memref<1x64xf32, #tpu.memory_space<vmem>>, %arg4: memref<64x32xf32, #tpu.memory_space<vmem>>, %arg5: memref<1x32xf32, #tpu.memory_space<vmem>>, %arg6: memref<32x2xf32, #tpu.memory_space<vmem>>, %arg7: memref<1x2xf32, #tpu.memory_space<vmem>>, %arg8: memref<8x2xf32, #tpu.memory_space<vmem>>) attributes {dimension_semantics = [#tpu.dimension_semantics<parallel>], iteration_bounds = array<i64: 1>, scalar_prefetch = 0 : i64, scratch_operands = 0 : i64, tpu.core_type = #tpu.core_type<tc>, window_params = [{transform_indices = @transform_0, window_bounds = array<i64: 8, 32>}, {pipeline_mode = #tpu.pipeline_mode<synchronous>, transform_indices = @transform_1, window_bounds = array<i64: 32, 64>}, {pipeline_mode = #tpu.pipeline_mode<synchronous>, transform_indices = @transform_2, window_bounds = array<i64: 1, 64>}, {pipeline_mode = #tpu.pipeline_mode<synchronous>, transform_indices = @transform_3, window_bounds = array<i64: 64, 32>}, {pipeline_mode = #tpu.pipeline_mode<synchronous>, transform_indices = @transform_4, window_bounds = array<i64: 1, 32>}, {pipeline_mode = #tpu.pipeline_mode<synchronous>, transform_indices = @transform_5, window_bounds = array<i64: 32, 2>}, {pipeline_mode = #tpu.pipeline_mode<synchronous>, transform_indices = @transform_6, window_bounds = array<i64: 1, 2>}, {transform_indices = @transform_7, window_bounds = array<i64: 8, 2>}]} {
    %c0 = arith.constant 0 : index
    %c0_0 = arith.constant 0 : index
    %0 = vector.load %arg1[%c0, %c0_0] : memref<8x32xf32, #tpu.memory_space<vmem>>, vector<8x32xf32>
    %1 = arith.truncf %0 : vector<8x32xf32> to vector<8x32xbf16>
    %c0_1 = arith.constant 0 : index
    %c0_2 = arith.constant 0 : index
    %2 = vector.load %arg2[%c0_1, %c0_2] : memref<32x64xf32, #tpu.memory_space<vmem>>, vector<32x64xf32>
    %3 = arith.truncf %2 : vector<32x64xf32> to vector<32x64xbf16>
    %cst = arith.constant dense<0.000000e+00> : vector<8x64xf32>
    %4 = tpu.matmul %1, %3, %cst {dimension_numbers = #tpu.dot_dimension_numbers<[1], [0], [0], [1], [0, 0, 1, 1], [], []>} : vector<8x32xbf16>, vector<32x64xbf16>, vector<8x64xf32> -> vector<8x64xf32>
    %c0_3 = arith.constant 0 : index
    %c0_4 = arith.constant 0 : index
    %5 = vector.load %arg3[%c0_3, %c0_4] : memref<1x64xf32, #tpu.memory_space<vmem>>, vector<1x64xf32>
    %6 = vector.broadcast %5 : vector<1x64xf32> to vector<8x64xf32>
    %7 = arith.addf %4, %6 : vector<8x64xf32>
    %cst_5 = arith.constant 0.000000e+00 : f32
    %8 = vector.broadcast %cst_5 : f32 to vector<8x64xf32>
    %9 = arith.maximumf %7, %8 : vector<8x64xf32>
    %10 = arith.truncf %9 : vector<8x64xf32> to vector<8x64xbf16>
    %c0_6 = arith.constant 0 : index
    %c0_7 = arith.constant 0 : index
    %11 = vector.load %arg4[%c0_6, %c0_7] : memref<64x32xf32, #tpu.memory_space<vmem>>, vector<64x32xf32>
    %12 = arith.truncf %11 : vector<64x32xf32> to vector<64x32xbf16>
    %cst_8 = arith.constant dense<0.000000e+00> : vector<8x32xf32>
    %13 = tpu.matmul %10, %12, %cst_8 {dimension_numbers = #tpu.dot_dimension_numbers<[1], [0], [0], [1], [0, 0, 1, 1], [], []>} : vector<8x64xbf16>, vector<64x32xbf16>, vector<8x32xf32> -> vector<8x32xf32>
    %c0_9 = arith.constant 0 : index
    %c0_10 = arith.constant 0 : index
    %14 = vector.load %arg5[%c0_9, %c0_10] : memref<1x32xf32, #tpu.memory_space<vmem>>, vector<1x32xf32>
    %15 = vector.broadcast %14 : vector<1x32xf32> to vector<8x32xf32>
    %16 = arith.addf %13, %15 : vector<8x32xf32>
    %17 = math.tanh %16 : vector<8x32xf32>
    %18 = arith.truncf %17 : vector<8x32xf32> to vector<8x32xbf16>
    %c0_11 = arith.constant 0 : index
    %c0_12 = arith.constant 0 : index
    %19 = vector.load %arg6[%c0_11, %c0_12] : memref<32x2xf32, #tpu.memory_space<vmem>>, vector<32x2xf32>
    %20 = arith.truncf %19 : vector<32x2xf32> to vector<32x2xbf16>
    %cst_13 = arith.constant dense<0.000000e+00> : vector<8x2xf32>
    %21 = tpu.matmul %18, %20, %cst_13 {dimension_numbers = #tpu.dot_dimension_numbers<[1], [0], [0], [1], [0, 0, 1, 1], [], []>} : vector<8x32xbf16>, vector<32x2xbf16>, vector<8x2xf32> -> vector<8x2xf32>
    %c0_14 = arith.constant 0 : index
    %c0_15 = arith.constant 0 : index
    %22 = vector.load %arg7[%c0_14, %c0_15] : memref<1x2xf32, #tpu.memory_space<vmem>>, vector<1x2xf32>
    %23 = vector.broadcast %22 : vector<1x2xf32> to vector<8x2xf32>
    %24 = arith.addf %21, %23 : vector<8x2xf32>
    %25 = arith.negf %24 : vector<8x2xf32>
    %26 = math.exp %25 : vector<8x2xf32>
    %cst_16 = arith.constant 1.000000e+00 : f32
    %27 = vector.broadcast %cst_16 : f32 to vector<8x2xf32>
    %28 = arith.addf %27, %26 : vector<8x2xf32>
    %29 = arith.divf %27, %28 : vector<8x2xf32>
    %c0_17 = arith.constant 0 : index
    %c0_18 = arith.constant 0 : index
    %30 = vector.load %arg8[%c0_17, %c0_18] : memref<8x2xf32, #tpu.memory_space<vmem>>, vector<8x2xf32>
    tpu.vector_store %arg8[%c0_17, %c0_18], %29 {strides = array<i32>} : memref<8x2xf32, #tpu.memory_space<vmem>>, vector<8x2xf32>,
    return
  }
  func.func @transform_0(%arg0: i32) -> (i32, i32) {
    %c0_i32 = arith.constant 0 : i32
    %c0_i32_0 = arith.constant 0 : i32
    return %arg0, %c0_i32 : i32, i32
  }
  func.func @transform_1(%arg0: i32) -> (i32, i32) {
    %c0_i32 = arith.constant 0 : i32
    %c0_i32_0 = arith.constant 0 : i32
    %c0_i32_1 = arith.constant 0 : i32
    return %c0_i32, %c0_i32_0 : i32, i32
  }
  func.func @transform_2(%arg0: i32) -> (i32, i32) {
    %c0_i32 = arith.constant 0 : i32
    %c0_i32_0 = arith.constant 0 : i32
    %c0_i32_1 = arith.constant 0 : i32
    return %c0_i32, %c0_i32_0 : i32, i32
  }
  func.func @transform_3(%arg0: i32) -> (i32, i32) {
    %c0_i32 = arith.constant 0 : i32
    %c0_i32_0 = arith.constant 0 : i32
    %c0_i32_1 = arith.constant 0 : i32
    return %c0_i32, %c0_i32_0 : i32, i32
  }
  func.func @transform_4(%arg0: i32) -> (i32, i32) {
    %c0_i32 = arith.constant 0 : i32
    %c0_i32_0 = arith.constant 0 : i32
    %c0_i32_1 = arith.constant 0 : i32
    return %c0_i32, %c0_i32_0 : i32, i32
  }
  func.func @transform_5(%arg0: i32) -> (i32, i32) {
    %c0_i32 = arith.constant 0 : i32
    %c0_i32_0 = arith.constant 0 : i32
    %c0_i32_1 = arith.constant 0 : i32
    return %c0_i32, %c0_i32_0 : i32, i32
  }
  func.func @transform_6(%arg0: i32) -> (i32, i32) {
    %c0_i32 = arith.constant 0 : i32
    %c0_i32_0 = arith.constant 0 : i32
    %c0_i32_1 = arith.constant 0 : i32
    return %c0_i32, %c0_i32_0 : i32, i32
  }
  func.func @transform_7(%arg0: i32) -> (i32, i32) {
    %c0_i32 = arith.constant 0 : i32
    %c0_i32_0 = arith.constant 0 : i32
    return %arg0, %c0_i32 : i32, i32
  }
}

</mosaic_0001>

<llo_original>
// kernel: tpu_custom_call.1
$region0: #{tpu_custom_call.1}
  #allocation0 [shape = 'u32[]', space=smem, size = 0x4, offset = 0x4, fixed_abs, tag = 'smem constant byte address 0x4 - core index']
  #allocation1 [shape = 'u32[72,128]{1,0:T(1,128)}', space=vmem, size = 0x9000, scoped, tag = 'internal scratch']
  %s0 = inlined_call_operand.vmem [shape: f32[8,32], index: 0, kind: input, shape index: {}]
  %s1 = inlined_call_operand.vmem [shape: f32[32,64], index: 1, kind: input, shape index: {}]
  %s2 = inlined_call_operand.vmem [shape: f32[1,64], index: 2, kind: input, shape index: {}]
  %s3 = inlined_call_operand.vmem [shape: f32[64,32], index: 3, kind: input, shape index: {}]
  %s4 = inlined_call_operand.vmem [shape: f32[1,32], index: 4, kind: input, shape index: {}]
  %s5 = inlined_call_operand.vmem [shape: f32[32,2], index: 5, kind: input, shape index: {}]
  %s6 = inlined_call_operand.vmem [shape: f32[1,2], index: 6, kind: input, shape index: {}]
  %s7 = inlined_call_operand.vmem [shape: f32[8,2], index: 7, kind: output, shape index: {}]
  %s8 = sld [smem:[#allocation0]]
  $region38: #{tpu_custom_call.1} parent=0
    _
  %s10 = ssub.s32 1, %s8
  %s11 = scalar_select 0, %s10, %s8
  // Predicated region
  $region2: #{tpu_custom_call.1} parent=0 // pred_check
    _
  $region3: #{tpu_custom_call.1} parent=0 // pred_check_branch
    %13 = sbr.rel (0) target = $region5
  $region4: #{tpu_custom_call.1} parent=0 // pred_region
    _
  $region5: #{tpu_custom_call.1} parent=0 // pred_fallthru
    _
  // Predicated region
  $region6: #{tpu_custom_call.1} parent=0 // pred_check
    _
  $region7: #{tpu_custom_call.1} parent=0 // pred_check_branch
    %15 = sbr.rel (0) target = $region9
  $region8: #{tpu_custom_call.1} parent=0 // pred_region
    _
  $region9: #{tpu_custom_call.1} parent=0 // pred_fallthru
    _
  // Predicated region
  $region10: #{tpu_custom_call.1} parent=0 // pred_check
    _
  $region11: #{tpu_custom_call.1} parent=0 // pred_check_branch
    %17 = sbr.rel (0) target = $region13
  $region12: #{tpu_custom_call.1} parent=0 // pred_region
    _
  $region13: #{tpu_custom_call.1} parent=0 // pred_fallthru
    _
  // Predicated region
  $region14: #{tpu_custom_call.1} parent=0 // pred_check
    _
  $region15: #{tpu_custom_call.1} parent=0 // pred_check_branch
    %19 = sbr.rel (0) target = $region17
  $region16: #{tpu_custom_call.1} parent=0 // pred_region
    _
  $region17: #{tpu_custom_call.1} parent=0 // pred_fallthru
    _
  // Predicated region
  $region18: #{tpu_custom_call.1} parent=0 // pred_check
    _
  $region19: #{tpu_custom_call.1} parent=0 // pred_check_branch
    %21 = sbr.rel (0) target = $region21
  $region20: #{tpu_custom_call.1} parent=0 // pred_region
    _
  $region21: #{tpu_custom_call.1} parent=0 // pred_fallthru
    _
  // Predicated region
  $region22: #{tpu_custom_call.1} parent=0 // pred_check
    _
  $region23: #{tpu_custom_call.1} parent=0 // pred_check_branch
    %23 = sbr.rel (0) target = $region25
  $region24: #{tpu_custom_call.1} parent=0 // pred_region
    _
  $region25: #{tpu_custom_call.1} parent=0 // pred_fallthru
    _
  // Predicated region
  $region26: #{tpu_custom_call.1} parent=0 // pred_check
    _
  $region27: #{tpu_custom_call.1} parent=0 // pred_check_branch
    %25 = sbr.rel (0) target = $region29
  $region28: #{tpu_custom_call.1} parent=0 // pred_region
    _
  $region29: #{tpu_custom_call.1} parent=0 // pred_fallthru
    _
  %v27 = vld [vmem:[%s0] sm:$0xff]
  %v28 = vpack.c.bf16 %v27, %v27
  %v29 = vld [vmem:[%s1] sm:$0xff]
  %v30 = vld [vmem:[%s1 + $0x8] sm:$0xff]
  %v31 = vld [vmem:[%s1 + $0x10] sm:$0xff]
  %v32 = vld [vmem:[%s1 + $0x18] sm:$0xff]
  %v33 = vpack.c.bf16 %v30, %v29
  %v34 = vpack.c.bf16 %v32, %v31
  %v35 = vld [vmem:[%s2] sm:$0x1]
  %v37 = vperm.slane %v35, 0
  %vm39 = vcmask 261120
  %v41 = vsel %vm39, %v28, 0
  %43 = vmatpush.bf16.msra.mxu0 0
  %44 = vmatpush.bf16.msra.mxu0 0
  %45 = vmatpush.bf16.msra.mxu0 0
  %46 = vmatpush.bf16.msra.mxu0 0
  %47 = vmatpush.bf16.msra.mxu0 0
  %48 = vmatpush.bf16.msra.mxu0 0
  %49 = vmatpush.bf16.msra.mxu0 %v34
  %50 = vmatpush.bf16.msra.mxu0 %v33
  %51 = vmatmul.bf16.gmra.mxu0 %v41
  %v52 = vpop.f32.mrf.mxu0
  %v53 = vadd.f32 %v37, %v52
  %v54 = vpop.f32.mrf.mxu0
  %55 = vdwg.mxu0
  %v56 = vmax.f32 %v53, 0.0
  %v57 = vpack.c.bf16 %v56, %v56
  %v58 = vld [vmem:[%s3] sm:$0xff]
  %v59 = vld [vmem:[%s3 + $0x8] sm:$0xff]
  %v60 = vld [vmem:[%s3 + $0x10] sm:$0xff]
  %v61 = vld [vmem:[%s3 + $0x18] sm:$0xff]
  %v62 = vld [vmem:[%s3 + $0x20] sm:$0xff]
  %v63 = vld [vmem:[%s3 + $0x28] sm:$0xff]
  %v64 = vld [vmem:[%s3 + $0x30] sm:$0xff]
  %v65 = vld [vmem:[%s3 + $0x38] sm:$0xff]
  %v66 = vpack.c.bf16 %v59, %v58
  %v67 = vpack.c.bf16 %v61, %v60
  %v68 = vpack.c.bf16 %v63, %v62
  %v69 = vpack.c.bf16 %v65, %v64
  %v70 = vld [vmem:[%s4] sm:$0x1]
  %v72 = vperm.slane %v70, 0
  %vm74 = vcmask 523264
  %v76 = vsel %vm74, %v57, 0
  %78 = vmatpush.bf16.msra.mxu0 0
  %79 = vmatpush.bf16.msra.mxu0 0
  %80 = vmatpush.bf16.msra.mxu0 0
  %81 = vmatpush.bf16.msra.mxu0 0
  %82 = vmatpush.bf16.msra.mxu0 %v69
  %83 = vmatpush.bf16.msra.mxu0 %v68
  %84 = vmatpush.bf16.msra.mxu0 %v67
  %85 = vmatpush.bf16.msra.mxu0 %v66
  %86 = vmatmul.bf16.gmra.mxu0 %v76
  %v87 = vpop.f32.mrf.mxu0
  %v88 = vadd.f32 %v72, %v87
  %v89 = vpop.f32.mrf.mxu0
  %90 = vdwg.mxu0
  %v91 = vtanh.pop %v88
  %v92 = vpack.c.bf16 %v91, %v91
  %v93 = vld [vmem:[%s5] sm:$0xff]
  %v94 = vld [vmem:[%s5 + $0x8] sm:$0xff]
  %v95 = vld [vmem:[%s5 + $0x10] sm:$0xff]
  %v96 = vld [vmem:[%s5 + $0x18] sm:$0xff]
  %v97 = vpack.c.bf16 %v94, %v93
  %v98 = vpack.c.bf16 %v96, %v95
  %v99 = vld [vmem:[%s6] sm:$0x1]
  %v101 = vperm.slane %v99, 0
  %v104 = vsel %vm39, %v92, 0
  %106 = vmatpush.bf16.msra.mxu0 0
  %107 = vmatpush.bf16.msra.mxu0 0
  %108 = vmatpush.bf16.msra.mxu0 0
  %109 = vmatpush.bf16.msra.mxu0 0
  %110 = vmatpush.bf16.msra.mxu0 0
  %111 = vmatpush.bf16.msra.mxu0 0
  %112 = vmatpush.bf16.msra.mxu0 %v98
  %113 = vmatpush.bf16.msra.mxu0 %v97
  %114 = vmatmul.bf16.gmra.mxu0 %v104
  %v115 = vpop.f32.mrf.mxu0
  %v116 = vadd.f32 %v101, %v115
  %v117 = vpop.f32.mrf.mxu0
  %118 = vdwg.mxu0
  %v119 = vxor.u32 %v116, 2147483648
  %v120 = vmul.f32 %v119, 1.442695
  %v121 = vpow.pop %v120
  %v122 = vadd.f32 %v121, 1.0
  %v123 = vrcp.pop %v122
  %v124 = vmul.f32 %v122, %v123
  %v125 = vsub.f32 1.0, %v124
  %v126 = vmul.f32 %v123, %v125
  %v127 = vadd.f32 %v123, %v126
  %vm128 = vweird.f32 %v122
  %vm129 = vweird.f32 %v123
  %vm130 = vmor %vm128, %vm129
  %v131 = vsel %vm130, %v123, %v127
  %v132 = vand.u32 2147483647, %v122
  %vm133 = vcmp.eq.f32.partialorder %v132, 8.507059e+37
  %v134 = vand.u32 %v122, 2147483648
  %v135 = vor.u32 1.1754944e-38, %v134
  %v136 = vsel %vm133, %v135, %v131
  %v137 = vmul.f32 1.0, %v136
  %vm138 = vcmask 15360
  %139 = vst.msk [vmem:[%s7] sm:$0xff] %vm138, %v137
  // Predicated region
  $region30: #{tpu_custom_call.1} parent=0 // pred_check
    _
  $region31: #{tpu_custom_call.1} parent=0 // pred_check_branch
    %141 = sbr.rel (0) target = $region33
  $region32: #{tpu_custom_call.1} parent=0 // pred_region
    _
  $region33: #{tpu_custom_call.1} parent=0 // pred_fallthru
    _
  // Predicated region
  $region34: #{tpu_custom_call.1} parent=0 // pred_check
    _
  $region35: #{tpu_custom_call.1} parent=0 // pred_check_branch
    %143 = sbr.rel (0) target = $region37
  $region36: #{tpu_custom_call.1} parent=0 // pred_region
    _
  $region37: #{tpu_custom_call.1} parent=0 // pred_fallthru
    _

</llo_original>
